<compile_context>
chip_gen: v7x
topology: tpu7x:2x2x1
jax: 0.10.0
libtpu: 0.0.40
codegen_flags: <defaults>
</compile_context>

<pallas_src>
import jax
import jax.numpy as jnp
from jax.experimental import pallas as pl
from jax.experimental.pallas import tpu as pltpu


_FOLD = 128          # logical rows folded into the lane dimension (out lanes = 3*128 = 384)
_MAX_TBF = 2048      # max folded rows per tile (~19 MB VMEM with double buffering)
_VMEM_LIMIT = 32 * 1024 * 1024


def _round_up(x, m):
    return (x + m - 1) // m * m


def _linear_hardsigmoid_small_kernel(x_ref, w_ref, b_ref, o_ref):
    """VPU-only path for tiny batches (B < 8): no MXU pass, no grid."""
    x = x_ref[...]            # (B, K) f32
    w = w_ref[...]            # (K, N) f32
    k_dim = x.shape[1]

    # Unrolled rank-1 accumulate: sum_k x[:, k] * w[k, :]  (pure VPU broadcasts).
    acc = x[:, 0:1] * w[0:1, :]
    for k in range(1, k_dim):
        acc = acc + x[:, k : k + 1] * w[k : k + 1, :]

    # b_ref already holds the fused term b/6 + 1/2.
    y = jnp.clip(acc * (1.0 / 6.0) + b_ref[...], 0.0, 1.0)
    o_ref[...] = y.astype(o_ref.dtype)


def _linear_hardsigmoid_folded_kernel(x_ref, w_ref, b_ref, o_ref):
    """Lane-dense MXU path: (tbf, 640) @ (640, 384) block-diagonal contraction."""
    acc = jnp.dot(x_ref[...], w_ref[...], preferred_element_type=jnp.float32)
    # b_ref already holds the fused term b/6 + 1/2, tiled to (1, 384).
    y = jnp.clip(acc * (1.0 / 6.0) + b_ref[...], 0.0, 1.0)
    o_ref[...] = y.astype(o_ref.dtype)


def linear_hardsigmoid(x, w, b):
    """x: (B, K) f32, w: (K, N) f32, b: (1, N) f32 -> (B, N) f32."""
    B, K = x.shape
    N = w.shape[1]
    b_fused = b * (1.0 / 6.0) + 0.5              # fold bias and the "+3" into one term

    if B < 8:
        # Tiny batch: no grid, everything resident in VMEM, VPU only.
        return pl.pallas_call(
            _linear_hardsigmoid_small_kernel,
            out_shape=jax.ShapeDtypeStruct((B, N), jnp.float32),
            in_specs=[
                pl.BlockSpec(memory_space=pltpu.MemorySpace.VMEM),
                pl.BlockSpec(memory_space=pltpu.MemorySpace.VMEM),
                pl.BlockSpec(memory_space=pltpu.MemorySpace.VMEM),
            ],
            out_specs=pl.BlockSpec(memory_space=pltpu.MemorySpace.VMEM),
        )(x, w, b_fused)

    # ---- Folded, lane-dense path ------------------------------------------
    r = _FOLD
    b_pad = _round_up(B, r)
    xp = x if b_pad == B else jnp.pad(x, ((0, b_pad - B), (0, 0)))
    bf = b_pad // r

    x_f = xp.reshape(bf, K * r)                              # contiguous view, free
    w_bd = jnp.kron(jnp.eye(r, dtype=w.dtype), w)            # (K*r, N*r) block-diagonal
    b_f = jnp.tile(b_fused, (1, r))                          # (1, N*r)

    # Tile selection: few big tiles (cdiv grid masks the partial tail), but at
    # least ~2-8 steps when there is enough work so both v7x TensorCores get a
    # share of the "parallel" batch axis; capped for the 32 MiB VMEM budget.
    if bf <= 32:
        tbf = bf                                             # single full-extent block
    else:
        tbf = min(_MAX_TBF, _round_up(pl.cdiv(bf, 4), 8))
    grid = (pl.cdiv(bf, tbf),)

    y_f = pl.pallas_call(
        _linear_hardsigmoid_folded_kernel,
        out_shape=jax.ShapeDtypeStruct((bf, N * r), jnp.float32),
        grid=grid,
        in_specs=[
            pl.BlockSpec((tbf, K * r), lambda i: (i, 0)),
            pl.BlockSpec((K * r, N * r), lambda i: (0, 0)),  # weights stay resident
            pl.BlockSpec((1, N * r), lambda i: (0, 0)),      # fused bias stays resident
        ],
        out_specs=pl.BlockSpec((tbf, N * r), lambda i: (i, 0)),
        compiler_params=pltpu.CompilerParams(
            dimension_semantics=("parallel",),
            vmem_limit_bytes=_VMEM_LIMIT,
        ),
    )(x_f, w_bd, b_f)

    return y_f.reshape(b_pad, N)[:B]


def _reference(x, w, b):
    return jnp.clip(x @ w + b + 3.0, 0.0, 6.0) / 6.0


if __name__ == "__main__":
    key = jax.random.PRNGKey(0)
    k_x, k_w, k_b, k_mid, k_rag, k_big = jax.random.split(key, 6)

    # Deterministic Linear(5, 3) parameters (uniform like torch default init).
    bound = 1.0 / jnp.sqrt(5.0)
    w = jax.random.uniform(k_w, (5, 3), minval=-bound, maxval=bound, dtype=jnp.float32)
    b = jax.random.uniform(k_b, (1, 3), minval=-bound, maxval=bound, dtype=jnp.float32)

    # Module-shaped input: x1 = torch.randn(1, 5)  -> small / no-grid VPU path.
    x_small = jax.random.normal(k_x, (1, 5), dtype=jnp.float32)
    out_small = linear_hardsigmoid(x_small, w, b)
    jax.block_until_ready(out_small)
    assert jnp.allclose(out_small, _reference(x_small, w, b), atol=1e-5, rtol=1e-5)

    # Folded path, B multiple of 128 (no pad), single grid step.
    # Tolerance is generous only to stay robust to MXU multi-pass f32 rounding;
    # outputs live in [0, 1] so 2e-3 absolute is still a meaningful check.
    x_mid = jax.random.normal(k_mid, (512, 5), dtype=jnp.float32)
    out_mid = linear_hardsigmoid(x_mid, w, b)
    jax.block_until_ready(out_mid)
    assert jnp.allclose(out_mid, _reference(x_mid, w, b), atol=2e-3)

    # Folded path, ragged B (wrapper pads to a multiple of 128).
    x_rag = jax.random.normal(k_rag, (300, 5), dtype=jnp.float32)
    out_rag = linear_hardsigmoid(x_rag, w, b)
    jax.block_until_ready(out_rag)
    assert out_rag.shape == (300, 3)
    assert jnp.allclose(out_rag, _reference(x_rag, w, b), atol=2e-3)

    # Folded path, large ragged B: multi-step cdiv grid with a masked partial
    # last block, "parallel" batch axis for megacore sharding.
    x_big = jax.random.normal(k_big, (70000, 5), dtype=jnp.float32)
    out_big = linear_hardsigmoid(x_big, w, b)
    jax.block_until_ready(out_big)
    assert out_big.shape == (70000, 3)
    assert jnp.allclose(out_big, _reference(x_big, w, b), atol=2e-3)

    print("KERNEL_OK")
</pallas_src>

<mosaic_0001>
module attributes {stable_mosaic.version = 11 : i64} {
  func.func @_linear_hardsigmoid_small_kernel(%arg0: memref<1x5xf32, #tpu.memory_space<vmem>>, %arg1: memref<5x3xf32, #tpu.memory_space<vmem>>, %arg2: memref<1x3xf32, #tpu.memory_space<vmem>>, %arg3: memref<1x3xf32, #tpu.memory_space<vmem>>) attributes {dimension_semantics = [], scalar_prefetch = 0 : i64, scratch_operands = 0 : i64, tpu.core_type = #tpu.core_type<tc>} {
    %c0 = arith.constant 0 : index
    %c0_0 = arith.constant 0 : index
    %0 = vector.load %arg0[%c0, %c0_0] : memref<1x5xf32, #tpu.memory_space<vmem>>, vector<1x5xf32>
    %c0_1 = arith.constant 0 : index
    %c0_2 = arith.constant 0 : index
    %1 = vector.load %arg1[%c0_1, %c0_2] : memref<5x3xf32, #tpu.memory_space<vmem>>, vector<5x3xf32>
    %2 = vector.extract_strided_slice %0 {offsets = [0, 0], sizes = [1, 1], strides = [1, 1]} : vector<1x5xf32> to vector<1x1xf32>
    %3 = vector.extract_strided_slice %1 {offsets = [0, 0], sizes = [1, 3], strides = [1, 1]} : vector<5x3xf32> to vector<1x3xf32>
    %4 = vector.broadcast %2 : vector<1x1xf32> to vector<1x3xf32>
    %5 = arith.mulf %4, %3 : vector<1x3xf32>
    %6 = vector.extract_strided_slice %0 {offsets = [0, 1], sizes = [1, 1], strides = [1, 1]} : vector<1x5xf32> to vector<1x1xf32>
    %7 = vector.extract_strided_slice %1 {offsets = [1, 0], sizes = [1, 3], strides = [1, 1]} : vector<5x3xf32> to vector<1x3xf32>
    %8 = vector.broadcast %6 : vector<1x1xf32> to vector<1x3xf32>
    %9 = arith.mulf %8, %7 : vector<1x3xf32>
    %10 = arith.addf %5, %9 : vector<1x3xf32>
    %11 = vector.extract_strided_slice %0 {offsets = [0, 2], sizes = [1, 1], strides = [1, 1]} : vector<1x5xf32> to vector<1x1xf32>
    %12 = vector.extract_strided_slice %1 {offsets = [2, 0], sizes = [1, 3], strides = [1, 1]} : vector<5x3xf32> to vector<1x3xf32>
    %13 = vector.broadcast %11 : vector<1x1xf32> to vector<1x3xf32>
    %14 = arith.mulf %13, %12 : vector<1x3xf32>
    %15 = arith.addf %10, %14 : vector<1x3xf32>
    %16 = vector.extract_strided_slice %0 {offsets = [0, 3], sizes = [1, 1], strides = [1, 1]} : vector<1x5xf32> to vector<1x1xf32>
    %17 = vector.extract_strided_slice %1 {offsets = [3, 0], sizes = [1, 3], strides = [1, 1]} : vector<5x3xf32> to vector<1x3xf32>
    %18 = vector.broadcast %16 : vector<1x1xf32> to vector<1x3xf32>
    %19 = arith.mulf %18, %17 : vector<1x3xf32>
    %20 = arith.addf %15, %19 : vector<1x3xf32>
    %21 = vector.extract_strided_slice %0 {offsets = [0, 4], sizes = [1, 1], strides = [1, 1]} : vector<1x5xf32> to vector<1x1xf32>
    %22 = vector.extract_strided_slice %1 {offsets = [4, 0], sizes = [1, 3], strides = [1, 1]} : vector<5x3xf32> to vector<1x3xf32>
    %23 = vector.broadcast %21 : vector<1x1xf32> to vector<1x3xf32>
    %24 = arith.mulf %23, %22 : vector<1x3xf32>
    %25 = arith.addf %20, %24 : vector<1x3xf32>
    %cst = arith.constant 0.166666672 : f32
    %26 = vector.broadcast %cst : f32 to vector<1x3xf32>
    %27 = arith.mulf %25, %26 : vector<1x3xf32>
    %c0_3 = arith.constant 0 : index
    %c0_4 = arith.constant 0 : index
    %28 = vector.load %arg2[%c0_3, %c0_4] : memref<1x3xf32, #tpu.memory_space<vmem>>, vector<1x3xf32>
    %29 = arith.addf %27, %28 : vector<1x3xf32>
    %cst_5 = arith.constant 0.000000e+00 : f32
    %cst_6 = arith.constant 1.000000e+00 : f32
    %30 = vector.broadcast %cst_5 : f32 to vector<1x3xf32>
    %31 = arith.maximumf %30, %29 : vector<1x3xf32>
    %32 = vector.broadcast %cst_6 : f32 to vector<1x3xf32>
    %33 = arith.minimumf %32, %31 : vector<1x3xf32>
    %c0_7 = arith.constant 0 : index
    %c0_8 = arith.constant 0 : index
    %34 = vector.load %arg3[%c0_7, %c0_8] : memref<1x3xf32, #tpu.memory_space<vmem>>, vector<1x3xf32>
    tpu.vector_store %arg3[%c0_7, %c0_8], %33 {strides = array<i32>} : memref<1x3xf32, #tpu.memory_space<vmem>>, vector<1x3xf32>,
    return
  }
}

</mosaic_0001>

<llo_original>
// kernel: tpu_custom_call.1
$region0: #{tpu_custom_call.1}
  #allocation0 [shape = 'u32[]', space=smem, size = 0x4, offset = 0x4, fixed_abs, tag = 'smem constant byte address 0x4 - core index']
  #allocation1 [shape = 'u32[144,128]{1,0:T(1,128)}', space=vmem, size = 0x12000, scoped, tag = 'internal scratch']
  %s0 = inlined_call_operand.vmem [shape: f32[1,5], index: 0, kind: input, shape index: {}]
  %s1 = inlined_call_operand.vmem [shape: f32[5,3], index: 1, kind: input, shape index: {}]
  %s2 = inlined_call_operand.vmem [shape: f32[1,3], index: 2, kind: input, shape index: {}]
  %s3 = inlined_call_operand.hbm [shape: f32[1,3], index: 3, kind: output, shape index: {}]
  %s4 = sld [smem:[#allocation0]]
  $region22: #{tpu_custom_call.1} parent=0
    _
  %s6 = ssub.s32 1, %s4
  %s7 = scalar_select 0, %s6, %s4
  $region1: #{tpu_custom_call.1} parent=0
    #allocation2 [shape = 'u8[512]{0}', space=vmem, size = 0x400, scoped, tag = 'output window, operand 0, single buffered']
    #allocation3 [shape = 's32[1]{0}', space=sflag, size = 0x4, scoped, tag = 'scoped memory for tpu_custom_call.1']
    %8 = vsyncpa [#allocation3], 0
    // Predicated region
    $region2: #{tpu_custom_call.1} parent=1 // pred_check
      _
    $region3: #{tpu_custom_call.1} parent=1 // pred_check_branch
      %10 = sbr.rel (0) target = $region5
    $region4: #{tpu_custom_call.1} parent=1 // pred_region
      _
    $region5: #{tpu_custom_call.1} parent=1 // pred_fallthru
      _
    // Predicated region
    $region6: #{tpu_custom_call.1} parent=1 // pred_check
      _
    $region7: #{tpu_custom_call.1} parent=1 // pred_check_branch
      %12 = sbr.rel (0) target = $region9
    $region8: #{tpu_custom_call.1} parent=1 // pred_region
      _
    $region9: #{tpu_custom_call.1} parent=1 // pred_fallthru
      _
    // Predicated region
    $region10: #{tpu_custom_call.1} parent=1 // pred_check
      _
    $region11: #{tpu_custom_call.1} parent=1 // pred_check_branch
      %14 = sbr.rel (0) target = $region13
    $region12: #{tpu_custom_call.1} parent=1 // pred_region
      _
    $region13: #{tpu_custom_call.1} parent=1 // pred_fallthru
      _
    %v15 = vld [vmem:[%s0] sm:$0x1]
    %v16 = vld [vmem:[%s1] sm:$0x1f]
    %18 = vset.pattern.permute.xlu0 0
    %19 = vperm.xlu0 %18, %v15
    %v20 = vpop.permute.xlu0 %19
    %v22 = vlaneseq
    %v23 = vshrl.u32 %v22, 7
    %v24 = vsub.s32 0, %v23
    %v25 = vrot.slane %v20, %v24
    %v26 = vmul.f32 %v25, %v16
    %27 = vset.pattern.permute.xlu0 1
    %28 = vperm.xlu0 %27, %v15
    %v29 = vpop.permute.xlu0 %28
    %v31 = vlaneseq
    %v32 = vshrl.u32 %v31, 7
    %v33 = vsub.s32 0, %v32
    %v34 = vrot.slane %v29, %v33
    %v35 = vmul.f32 %v34, %v16
    %v37 = vrot.slane %v35, 1
    %v39 = vadd.f32 %v26, %v37
    %40 = vset.pattern.permute.xlu0 2
    %41 = vperm.xlu0 %40, %v15
    %v42 = vpop.permute.xlu0 %41
    %v44 = vlaneseq
    %v45 = vshrl.u32 %v44, 7
    %v46 = vsub.s32 0, %v45
    %v47 = vrot.slane %v42, %v46
    %v48 = vmul.f32 %v47, %v16
    %v50 = vrot.slane %v48, 2
    %v52 = vadd.f32 %v39, %v50
    %53 = vset.pattern.permute.xlu0 3
    %54 = vperm.xlu0 %53, %v15
    %v55 = vpop.permute.xlu0 %54
    %v57 = vlaneseq
    %v58 = vshrl.u32 %v57, 7
    %v59 = vsub.s32 0, %v58
    %v60 = vrot.slane %v55, %v59
    %v61 = vmul.f32 %v60, %v16
    %v63 = vrot.slane %v61, 3
    %v65 = vadd.f32 %v52, %v63
    %66 = vset.pattern.permute.xlu0 4
    %67 = vperm.xlu0 %66, %v15
    %v68 = vpop.permute.xlu0 %67
    %v70 = vlaneseq
    %v71 = vshrl.u32 %v70, 7
    %v72 = vsub.s32 0, %v71
    %v73 = vrot.slane %v68, %v72
    %v74 = vmul.f32 %v73, %v16
    %v76 = vrot.slane %v74, 4
    %v78 = vadd.f32 %v65, %v76
    %v79 = vmul.f32 %v78, 0.16666667
    %v80 = vld [vmem:[%s2] sm:$0x1]
    %v81 = vadd.f32 %v79, %v80
    %v82 = vmax.f32 %v81, 0.0
    %v83 = vmin.f32 %v82, 1.0
    %vm84 = vcmask 16384
    %85 = vst.msk [vmem:[#allocation2] sm:$0x1] %vm84, %v83
    // Predicated region
    $region14: #{tpu_custom_call.1} parent=1 // pred_check
      _
    $region15: #{tpu_custom_call.1} parent=1 // pred_check_branch
      %87 = sbr.rel (0) target = $region17
    $region16: #{tpu_custom_call.1} parent=1 // pred_region
      %s89 = ssub.s32 16, 16
      %90 = vsyncadd [#allocation3], %s89
      %s92 = sshll.u32 [#allocation2], 4
      %s93 = int_to_ptr.vmem [resolvable:$true] %s92
      %95 = dma.vmem_to_hbm [thread:$0]  %s93, 16, %s3, [#allocation3]
    $region17: #{tpu_custom_call.1} parent=1 // pred_fallthru
      _
    // Predicated region
    $region18: #{tpu_custom_call.1} parent=1 // pred_check
      _
    $region19: #{tpu_custom_call.1} parent=1 // pred_check_branch
      %97 = sbr.rel (0) target = $region21
    $region20: #{tpu_custom_call.1} parent=1 // pred_region
      %98 = dma.done [#allocation3], 16
    $region21: #{tpu_custom_call.1} parent=1 // pred_fallthru
      _
    %99 = vsyncpa [#allocation3], 1

</llo_original>
